<compile_context>
chip_gen: v6e
topology: v6e:2x2x1
jax: 0.10.0
libtpu: 0.0.40
codegen_flags: <defaults>
</compile_context>

<pallas_src>
import functools

import numpy as np
import jax
import jax.numpy as jnp
from jax.experimental import pallas as pl
from jax.experimental.pallas import tpu as pltpu


# ----------------------------------------------------------------------------
# Pallas kernel: BN1 -> Conv1d(k=3, pad=1) -> BN2 -> Hardtanh, fully fused.
# ----------------------------------------------------------------------------
def cnn_block_kernel(length, x_ref, g1_ref, b1_ref, w_ref, g2_ref, b2_ref, o_ref):
    """All tensors channel-major, flat over (batch, length).

    x_ref : (Cin,  N*L)    f32  input
    g1/b1 : (Cin,  1)      f32  BN1 affine params
    w_ref : (3, Cout, Cin) f32  conv weight, tap-major (tap0->y[l-1], 1->y[l], 2->y[l+1])
    g2/b2 : (Cout, 1)      f32  BN2 affine params
    o_ref : (Cout, N*L)    f32  output
    """
    eps = 1e-5
    c_in, nl = x_ref.shape
    inv_nl = 1.0 / nl

    x = x_ref[...]                                                 # (Cin, N*L) f32

    # ---- BN1 statistics: one pass (sum + sum of squares), biased variance ----
    m1 = jnp.sum(x, axis=1, keepdims=True) * inv_nl                # (Cin, 1)
    ex2 = jnp.sum(x * x, axis=1, keepdims=True) * inv_nl
    var1 = jnp.maximum(ex2 - m1 * m1, 0.0)
    a_col = g1_ref[...] * jax.lax.rsqrt(var1 + eps)                # BN1 scale (Cin,1)

    # Fold BN1 into ONE per-element subtract plus a per-channel weight scale:
    #   BN1(x) = a*(x - m1) + b1 = a*(x - (m1 - b1/a))
    # (exact, incl. the conv zero-padding, since the padded value is 0 either way)
    # TODO(synk): guard the b1/a division if g1 could be exactly 0 (PyTorch
    # default affine weight is 1, so it cannot be here).
    shift = m1 - b1_ref[...] / a_col                               # (Cin, 1)
    t = x - shift                                                  # (Cin, N*L) f32

    # ---- Conv taps via XLU roll + boundary mask (zero padding at seq edges) ---
    pos = jax.lax.broadcasted_iota(jnp.int32, (1, nl), 1) % length
    t_m1 = jnp.where(pos == 0, 0.0,
                     pltpu.roll(t, shift=1, axis=1))               # y[l-1]
    t_p1 = jnp.where(pos == length - 1, 0.0,
                     pltpu.roll(t, shift=nl - 1, axis=1))          # y[l+1] (roll by -1)

    # ---- Per-lane copy of the BN1 scale for the weight fold -------------------
    # (Cin,1) sublane vector -> (1,Cin) lane vector via broadcast + diagonal mask
    # + sublane reduce (avoids relying on small-reshape relayouts).
    rows = jax.lax.broadcasted_iota(jnp.int32, (c_in, c_in), 0)
    cols = jax.lax.broadcasted_iota(jnp.int32, (c_in, c_in), 1)
    a_row = jnp.sum(jnp.where(rows == cols, a_col, 0.0),
                    axis=0, keepdims=True)                         # (1, Cin)

    # ---- Conv1d(k=3, pad=1): three accumulating 2-D MXU matmuls ---------------
    # bf16 operands (MXU-native), f32 accumulation; weights pushed once per tap.
    w0 = (w_ref[0] * a_row).astype(jnp.bfloat16)                   # (Cout, Cin)
    w1 = (w_ref[1] * a_row).astype(jnp.bfloat16)
    w2 = (w_ref[2] * a_row).astype(jnp.bfloat16)
    conv = jnp.dot(w1, t.astype(jnp.bfloat16),
                   preferred_element_type=jnp.float32)             # (Cout, N*L)
    conv += jnp.dot(w0, t_m1.astype(jnp.bfloat16),
                    preferred_element_type=jnp.float32)
    conv += jnp.dot(w2, t_p1.astype(jnp.bfloat16),
                    preferred_element_type=jnp.float32)
    # Conv bias intentionally omitted: a per-output-channel constant is exactly
    # cancelled by BN2's (training-mode) mean subtraction below.

    # ---- BN2 (single-pass stats) + Hardtanh -----------------------------------
    m2 = jnp.sum(conv, axis=1, keepdims=True) * inv_nl             # (Cout, 1)
    ey2 = jnp.sum(conv * conv, axis=1, keepdims=True) * inv_nl
    var2 = jnp.maximum(ey2 - m2 * m2, 0.0)
    z = (conv - m2) * (g2_ref[...] * jax.lax.rsqrt(var2 + eps)) + b2_ref[...]
    o_ref[...] = jnp.clip(z, -1.0, 1.0).astype(o_ref.dtype)


def cnn_block_pallas(x, g1, b1, w_tap, g2, b2):
    n, c_in, length = x.shape
    c_out = w_tap.shape[1]
    nl = n * length
    # Channel-major, lane-dense flat layout (layout plumbing kept in the wrapper).
    x_cm = jnp.transpose(x, (1, 0, 2)).reshape(c_in, nl)
    out_cm = pl.pallas_call(
        functools.partial(cnn_block_kernel, length),
        out_shape=jax.ShapeDtypeStruct((c_out, nl), jnp.float32),
        in_specs=[pl.BlockSpec(memory_space=pltpu.MemorySpace.VMEM)] * 6,
        out_specs=pl.BlockSpec(memory_space=pltpu.MemorySpace.VMEM),
        compiler_params=pltpu.CompilerParams(vmem_limit_bytes=32 * 1024 * 1024),
    )(x_cm, g1, b1, w_tap, g2, b2)
    # TODO(synk): for production N*L beyond VMEM, tile over L (halo of 1,
    # blocks >= 512 lanes) with a two-pass BN (stats kernel + normalize/conv
    # kernel) and a "parallel" grid axis so both v7x TensorCores are used.
    return jnp.transpose(out_cm.reshape(c_out, n, length), (1, 0, 2))


# ----------------------------------------------------------------------------
# Module wrapper (parameters match PyTorch default initialization).
# ----------------------------------------------------------------------------
class CnnBlockPallas:
    """JAX/Pallas port of CnnBlock: BN1d -> Conv1d(k=3,p=1) -> BN1d -> Hardtanh."""

    def __init__(self, input_size, hidden_size, key):
        c_in, c_out = input_size, hidden_size
        k = 1.0 / np.sqrt(c_in * 3)                 # PyTorch Conv1d init bound
        kw, kb = jax.random.split(key)
        self.w_conv = jax.random.uniform(kw, (c_out, c_in, 3), jnp.float32, -k, k)
        self.cb = jax.random.uniform(kb, (c_out,), jnp.float32, -k, k)
        # Tap-major packed weight for the kernel: (3, Cout, Cin).
        self.w_tap = jnp.transpose(self.w_conv, (2, 0, 1))
        # BatchNorm1d affine params (PyTorch defaults: weight=1, bias=0).
        self.g1 = jnp.ones((c_in, 1), jnp.float32)
        self.b1 = jnp.zeros((c_in, 1), jnp.float32)
        self.g2 = jnp.ones((c_out, 1), jnp.float32)
        self.b2 = jnp.zeros((c_out, 1), jnp.float32)
        # TODO(synk): running_mean/running_var buffer updates (a training-time
        # side effect of BatchNorm) are not modeled; they do not affect output.

    def forward(self, x):
        return cnn_block_pallas(x, self.g1, self.b1, self.w_tap, self.g2, self.b2)

    def reference_forward(self, x):
        """Pure-JAX f32 reference with the same training-mode BN semantics
        (includes the conv bias, which BN2 cancels)."""
        eps = 1e-5
        m1 = jnp.mean(x, axis=(0, 2), keepdims=True)
        v1 = jnp.var(x, axis=(0, 2), keepdims=True)
        y = ((x - m1) / jnp.sqrt(v1 + eps)
             * self.g1.reshape(1, -1, 1) + self.b1.reshape(1, -1, 1))
        conv = jax.lax.conv_general_dilated(
            y, self.w_conv, window_strides=(1,), padding=((1, 1),),
            dimension_numbers=("NCH", "OIH", "NCH")) + self.cb.reshape(1, -1, 1)
        m2 = jnp.mean(conv, axis=(0, 2), keepdims=True)
        v2 = jnp.var(conv, axis=(0, 2), keepdims=True)
        z = ((conv - m2) / jnp.sqrt(v2 + eps)
             * self.g2.reshape(1, -1, 1) + self.b2.reshape(1, -1, 1))
        return jnp.clip(z, -1.0, 1.0)


# ----------------------------------------------------------------------------
if __name__ == "__main__":
    input_size = 16      # Conv1d in_channels
    hidden_size = 32     # Conv1d out_channels
    N, L = 4, 128        # batch, sequence length (N*L = 512 lanes, lane-dense)

    key = jax.random.PRNGKey(0)
    key, k_in, k_model = jax.random.split(key, 3)
    x = jax.random.normal(k_in, (N, input_size, L), jnp.float32)

    block = CnnBlockPallas(input_size, hidden_size, k_model)
    out = jax.block_until_ready(block.forward(x))

    assert out.shape == (N, hidden_size, L), out.shape
    assert bool(jnp.all(jnp.isfinite(out)))

    # Validate against a pure-JAX f32 reference of the same forward semantics.
    # bf16 MXU operands vs. all-f32 reference: loose max tolerance, tight mean.
    ref = block.reference_forward(x)
    max_err = float(jnp.max(jnp.abs(out - ref)))
    mean_err = float(jnp.mean(jnp.abs(out - ref)))
    assert max_err < 3e-2, max_err
    assert mean_err < 5e-3, mean_err
    print("KERNEL_OK")
</pallas_src>

<mosaic_0001>
module attributes {stable_mosaic.version = 11 : i64} {
  func.func @cnn_block_kernel(%arg0: memref<16x512xf32, #tpu.memory_space<vmem>>, %arg1: memref<16x1xf32, #tpu.memory_space<vmem>>, %arg2: memref<16x1xf32, #tpu.memory_space<vmem>>, %arg3: memref<3x32x16xf32, #tpu.memory_space<vmem>>, %arg4: memref<32x1xf32, #tpu.memory_space<vmem>>, %arg5: memref<32x1xf32, #tpu.memory_space<vmem>>, %arg6: memref<32x512xf32, #tpu.memory_space<vmem>>) attributes {dimension_semantics = [], scalar_prefetch = 0 : i64, scratch_operands = 0 : i64, tpu.core_type = #tpu.core_type<tc>} {
    %c0 = arith.constant 0 : index
    %c0_0 = arith.constant 0 : index
    %0 = vector.load %arg0[%c0, %c0_0] : memref<16x512xf32, #tpu.memory_space<vmem>>, vector<16x512xf32>
    %cst = arith.constant dense<0.000000e+00> : vector<16xf32>
    %1 = vector.multi_reduction <add>, %0, %cst [1] : vector<16x512xf32> to vector<16xf32>
    %2 = vector.shape_cast %1 : vector<16xf32> to vector<16x1xf32>
    %cst_1 = arith.constant 0.001953125 : f32
    %3 = vector.broadcast %cst_1 : f32 to vector<16x1xf32>
    %4 = arith.mulf %2, %3 : vector<16x1xf32>
    %5 = arith.mulf %0, %0 : vector<16x512xf32>
    %cst_2 = arith.constant dense<0.000000e+00> : vector<16xf32>
    %6 = vector.multi_reduction <add>, %5, %cst_2 [1] : vector<16x512xf32> to vector<16xf32>
    %7 = vector.shape_cast %6 : vector<16xf32> to vector<16x1xf32>
    %cst_3 = arith.constant 0.001953125 : f32
    %8 = vector.broadcast %cst_3 : f32 to vector<16x1xf32>
    %9 = arith.mulf %7, %8 : vector<16x1xf32>
    %10 = arith.mulf %4, %4 : vector<16x1xf32>
    %11 = arith.subf %9, %10 : vector<16x1xf32>
    %cst_4 = arith.constant 0.000000e+00 : f32
    %12 = vector.broadcast %cst_4 : f32 to vector<16x1xf32>
    %13 = arith.maximumf %11, %12 : vector<16x1xf32>
    %c0_5 = arith.constant 0 : index
    %c0_6 = arith.constant 0 : index
    %14 = vector.load %arg1[%c0_5, %c0_6] : memref<16x1xf32, #tpu.memory_space<vmem>>, vector<16x1xf32>
    %cst_7 = arith.constant 9.99999974E-6 : f32
    %15 = vector.broadcast %cst_7 : f32 to vector<16x1xf32>
    %16 = arith.addf %13, %15 : vector<16x1xf32>
    %17 = math.rsqrt %16 : vector<16x1xf32>
    %18 = arith.mulf %14, %17 : vector<16x1xf32>
    %c0_8 = arith.constant 0 : index
    %c0_9 = arith.constant 0 : index
    %19 = vector.load %arg2[%c0_8, %c0_9] : memref<16x1xf32, #tpu.memory_space<vmem>>, vector<16x1xf32>
    %20 = arith.divf %19, %18 : vector<16x1xf32>
    %21 = arith.subf %4, %20 : vector<16x1xf32>
    %22 = vector.broadcast %21 : vector<16x1xf32> to vector<16x512xf32>
    %23 = arith.subf %0, %22 : vector<16x512xf32>
    %24 = tpu.iota {dimensions = array<i32: 1>} : vector<1x512xi32>
    %c128_i32 = arith.constant 128 : i32
    %c0_i32 = arith.constant 0 : i32
    %25 = arith.cmpi eq, %c128_i32, %c0_i32 : i32
    %c1_i32 = arith.constant 1 : i32
    %26 = arith.select %25, %c1_i32, %c128_i32 : i32
    %27 = vector.broadcast %26 : i32 to vector<1x512xi32>
    %28 = arith.remsi %24, %27 : vector<1x512xi32>
    %c0_i32_10 = arith.constant 0 : i32
    %29 = vector.broadcast %c0_i32_10 : i32 to vector<1x512xi32>
    %30 = arith.cmpi ne, %28, %29 : vector<1x512xi32>
    %c0_i32_11 = arith.constant 0 : i32
    %31 = vector.broadcast %c0_i32_11 : i32 to vector<1x512xi32>
    %32 = arith.cmpi slt, %28, %31 : vector<1x512xi32>
    %c0_i32_12 = arith.constant 0 : i32
    %33 = arith.cmpi slt, %26, %c0_i32_12 : i32
    %34 = vector.broadcast %33 : i1 to vector<1x512xi1>
    %35 = vector.broadcast %34 : vector<1x512xi1> to vector<1x512xi1>
    %36 = arith.xori %32, %35 : vector<1x512xi1>
    %37 = arith.andi %36, %30 : vector<1x512xi1>
    %38 = vector.broadcast %26 : i32 to vector<1x512xi32>
    %39 = arith.addi %28, %38 : vector<1x512xi32>
    %40 = arith.select %37, %39, %28 : vector<1x512xi1>, vector<1x512xi32>
    %c0_i32_13 = arith.constant 0 : i32
    %41 = vector.broadcast %c0_i32_13 : i32 to vector<1x512xi32>
    %42 = arith.cmpi eq, %40, %41 : vector<1x512xi32>
    %c1_i32_14 = arith.constant 1 : i32
    %43 = tpu.dynamic_rotate %23 by %c1_i32_14 dim 1 : vector<16x512xf32>, i32 -> vector<16x512xf32>
    %cst_15 = arith.constant 0.000000e+00 : f32
    %44 = vector.shape_cast %42 : vector<1x512xi1> to vector<1x512xi1>
    %45 = vector.broadcast %44 : vector<1x512xi1> to vector<16x512xi1>
    %46 = vector.broadcast %cst_15 : f32 to vector<16x512xf32>
    %47 = arith.select %45, %46, %43 : vector<16x512xi1>, vector<16x512xf32>
    %c127_i32 = arith.constant 127 : i32
    %48 = vector.broadcast %c127_i32 : i32 to vector<1x512xi32>
    %49 = arith.cmpi eq, %40, %48 : vector<1x512xi32>
    %c511_i32 = arith.constant 511 : i32
    %50 = tpu.dynamic_rotate %23 by %c511_i32 dim 1 : vector<16x512xf32>, i32 -> vector<16x512xf32>
    %cst_16 = arith.constant 0.000000e+00 : f32
    %51 = vector.shape_cast %49 : vector<1x512xi1> to vector<1x512xi1>
    %52 = vector.broadcast %51 : vector<1x512xi1> to vector<16x512xi1>
    %53 = vector.broadcast %cst_16 : f32 to vector<16x512xf32>
    %54 = arith.select %52, %53, %50 : vector<16x512xi1>, vector<16x512xf32>
    %55 = tpu.iota {dimensions = array<i32: 0>} : vector<16x16xi32>
    %56 = tpu.iota {dimensions = array<i32: 1>} : vector<16x16xi32>
    %57 = arith.cmpi eq, %55, %56 : vector<16x16xi32>
    %cst_17 = arith.constant 0.000000e+00 : f32
    %58 = vector.shape_cast %18 : vector<16x1xf32> to vector<16x1xf32>
    %59 = vector.broadcast %58 : vector<16x1xf32> to vector<16x16xf32>
    %60 = vector.broadcast %cst_17 : f32 to vector<16x16xf32>
    %61 = arith.select %57, %59, %60 : vector<16x16xi1>, vector<16x16xf32>
    %cst_18 = arith.constant dense<0.000000e+00> : vector<16xf32>
    %62 = vector.multi_reduction <add>, %61, %cst_18 [0] : vector<16x16xf32> to vector<16xf32>
    %63 = vector.shape_cast %62 : vector<16xf32> to vector<1x16xf32>
    %c0_19 = arith.constant 0 : index
    %c0_20 = arith.constant 0 : index
    %c0_21 = arith.constant 0 : index
    %64 = vector.load %arg3[%c0_19, %c0_20, %c0_21] : memref<3x32x16xf32, #tpu.memory_space<vmem>>, vector<1x32x16xf32>
    %65 = vector.shape_cast %64 : vector<1x32x16xf32> to vector<32x16xf32>
    %66 = vector.broadcast %63 : vector<1x16xf32> to vector<32x16xf32>
    %67 = arith.mulf %65, %66 : vector<32x16xf32>
    %68 = arith.truncf %67 : vector<32x16xf32> to vector<32x16xbf16>
    %c1 = arith.constant 1 : index
    %c0_22 = arith.constant 0 : index
    %c0_23 = arith.constant 0 : index
    %69 = vector.load %arg3[%c1, %c0_22, %c0_23] : memref<3x32x16xf32, #tpu.memory_space<vmem>>, vector<1x32x16xf32>
    %70 = vector.shape_cast %69 : vector<1x32x16xf32> to vector<32x16xf32>
    %71 = vector.broadcast %63 : vector<1x16xf32> to vector<32x16xf32>
    %72 = arith.mulf %70, %71 : vector<32x16xf32>
    %73 = arith.truncf %72 : vector<32x16xf32> to vector<32x16xbf16>
    %c2 = arith.constant 2 : index
    %c0_24 = arith.constant 0 : index
    %c0_25 = arith.constant 0 : index
    %74 = vector.load %arg3[%c2, %c0_24, %c0_25] : memref<3x32x16xf32, #tpu.memory_space<vmem>>, vector<1x32x16xf32>
    %75 = vector.shape_cast %74 : vector<1x32x16xf32> to vector<32x16xf32>
    %76 = vector.broadcast %63 : vector<1x16xf32> to vector<32x16xf32>
    %77 = arith.mulf %75, %76 : vector<32x16xf32>
    %78 = arith.truncf %77 : vector<32x16xf32> to vector<32x16xbf16>
    %79 = arith.truncf %23 : vector<16x512xf32> to vector<16x512xbf16>
    %cst_26 = arith.constant dense<0.000000e+00> : vector<32x512xf32>
    %80 = tpu.matmul %73, %79, %cst_26 {dimension_numbers = #tpu.dot_dimension_numbers<[1], [0], [0], [1], [0, 0, 1, 1], [], []>} : vector<32x16xbf16>, vector<16x512xbf16>, vector<32x512xf32> -> vector<32x512xf32>
    %81 = arith.truncf %47 : vector<16x512xf32> to vector<16x512xbf16>
    %cst_27 = arith.constant dense<0.000000e+00> : vector<32x512xf32>
    %82 = tpu.matmul %68, %81, %cst_27 {dimension_numbers = #tpu.dot_dimension_numbers<[1], [0], [0], [1], [0, 0, 1, 1], [], []>} : vector<32x16xbf16>, vector<16x512xbf16>, vector<32x512xf32> -> vector<32x512xf32>
    %83 = arith.addf %80, %82 : vector<32x512xf32>
    %84 = arith.truncf %54 : vector<16x512xf32> to vector<16x512xbf16>
    %cst_28 = arith.constant dense<0.000000e+00> : vector<32x512xf32>
    %85 = tpu.matmul %78, %84, %cst_28 {dimension_numbers = #tpu.dot_dimension_numbers<[1], [0], [0], [1], [0, 0, 1, 1], [], []>} : vector<32x16xbf16>, vector<16x512xbf16>, vector<32x512xf32> -> vector<32x512xf32>
    %86 = arith.addf %83, %85 : vector<32x512xf32>
    %cst_29 = arith.constant dense<0.000000e+00> : vector<32xf32>
    %87 = vector.multi_reduction <add>, %86, %cst_29 [1] : vector<32x512xf32> to vector<32xf32>
    %88 = vector.shape_cast %87 : vector<32xf32> to vector<32x1xf32>
    %cst_30 = arith.constant 0.001953125 : f32
    %89 = vector.broadcast %cst_30 : f32 to vector<32x1xf32>
    %90 = arith.mulf %88, %89 : vector<32x1xf32>
    %91 = arith.mulf %86, %86 : vector<32x512xf32>
    %cst_31 = arith.constant dense<0.000000e+00> : vector<32xf32>
    %92 = vector.multi_reduction <add>, %91, %cst_31 [1] : vector<32x512xf32> to vector<32xf32>
    %93 = vector.shape_cast %92 : vector<32xf32> to vector<32x1xf32>
    %cst_32 = arith.constant 0.001953125 : f32
    %94 = vector.broadcast %cst_32 : f32 to vector<32x1xf32>
    %95 = arith.mulf %93, %94 : vector<32x1xf32>
    %96 = arith.mulf %90, %90 : vector<32x1xf32>
    %97 = arith.subf %95, %96 : vector<32x1xf32>
    %cst_33 = arith.constant 0.000000e+00 : f32
    %98 = vector.broadcast %cst_33 : f32 to vector<32x1xf32>
    %99 = arith.maximumf %97, %98 : vector<32x1xf32>
    %100 = vector.broadcast %90 : vector<32x1xf32> to vector<32x512xf32>
    %101 = arith.subf %86, %100 : vector<32x512xf32>
    %c0_34 = arith.constant 0 : index
    %c0_35 = arith.constant 0 : index
    %102 = vector.load %arg4[%c0_34, %c0_35] : memref<32x1xf32, #tpu.memory_space<vmem>>, vector<32x1xf32>
    %cst_36 = arith.constant 9.99999974E-6 : f32
    %103 = vector.broadcast %cst_36 : f32 to vector<32x1xf32>
    %104 = arith.addf %99, %103 : vector<32x1xf32>
    %105 = math.rsqrt %104 : vector<32x1xf32>
    %106 = arith.mulf %102, %105 : vector<32x1xf32>
    %107 = vector.broadcast %106 : vector<32x1xf32> to vector<32x512xf32>
    %108 = arith.mulf %101, %107 : vector<32x512xf32>
    %c0_37 = arith.constant 0 : index
    %c0_38 = arith.constant 0 : index
    %109 = vector.load %arg5[%c0_37, %c0_38] : memref<32x1xf32, #tpu.memory_space<vmem>>, vector<32x1xf32>
    %110 = vector.broadcast %109 : vector<32x1xf32> to vector<32x512xf32>
    %111 = arith.addf %108, %110 : vector<32x512xf32>
    %cst_39 = arith.constant -1.000000e+00 : f32
    %cst_40 = arith.constant 1.000000e+00 : f32
    %112 = vector.broadcast %cst_39 : f32 to vector<32x512xf32>
    %113 = arith.maximumf %112, %111 : vector<32x512xf32>
    %114 = vector.broadcast %cst_40 : f32 to vector<32x512xf32>
    %115 = arith.minimumf %114, %113 : vector<32x512xf32>
    %c0_41 = arith.constant 0 : index
    %c0_42 = arith.constant 0 : index
    %116 = vector.load %arg6[%c0_41, %c0_42] : memref<32x512xf32, #tpu.memory_space<vmem>>, vector<32x512xf32>
    tpu.vector_store %arg6[%c0_41, %c0_42], %115 {strides = array<i32>} : memref<32x512xf32, #tpu.memory_space<vmem>>, vector<32x512xf32>,
    return
  }
}

</mosaic_0001>

<llo_original>
// kernel: tpu_custom_call.1
$region0: #{tpu_custom_call.1}
  #allocation0 [shape = 'u32[]', space=smem, size = 0x4, offset = 0x4, fixed_abs, tag = 'smem constant byte address 0x4 - core index']
  #allocation1 [shape = 'u32[144,128]{1,0:T(1,128)}', space=vmem, size = 0x12000, scoped, tag = 'internal scratch']
  %s0 = inlined_call_operand.vmem [shape: f32[16,512], index: 0, kind: input, shape index: {}]
  %s1 = inlined_call_operand.vmem [shape: f32[16,1], index: 1, kind: input, shape index: {}]
  %s2 = inlined_call_operand.vmem [shape: f32[16,1], index: 2, kind: input, shape index: {}]
  %s3 = inlined_call_operand.vmem [shape: f32[3,32,16], index: 3, kind: input, shape index: {}]
  %s4 = inlined_call_operand.vmem [shape: f32[32,1], index: 4, kind: input, shape index: {}]
  %s5 = inlined_call_operand.vmem [shape: f32[32,1], index: 5, kind: input, shape index: {}]
  %s6 = inlined_call_operand.hbm [shape: f32[32,512], index: 6, kind: output, shape index: {}]
  %s7 = sld [smem:[#allocation0]]
  $region34: #{tpu_custom_call.1} parent=0
    _
  %s9 = ssub.s32 1, %s7
  %s10 = scalar_select 0, %s9, %s7
  $region1: #{tpu_custom_call.1} parent=0
    #allocation2 [shape = 'u8[65536]{0}', space=vmem, size = 0x10000, scoped, tag = 'output window, operand 0, single buffered']
    #allocation3 [shape = 's32[1]{0}', space=sflag, size = 0x4, scoped, tag = 'scoped memory for tpu_custom_call.1']
    %11 = vsyncpa [#allocation3], 0
    // Predicated region
    $region2: #{tpu_custom_call.1} parent=1 // pred_check
      _
    $region3: #{tpu_custom_call.1} parent=1 // pred_check_branch
      %13 = sbr.rel (0) target = $region5
    $region4: #{tpu_custom_call.1} parent=1 // pred_region
      _
    $region5: #{tpu_custom_call.1} parent=1 // pred_fallthru
      _
    // Predicated region
    $region6: #{tpu_custom_call.1} parent=1 // pred_check
      _
    $region7: #{tpu_custom_call.1} parent=1 // pred_check_branch
      %15 = sbr.rel (0) target = $region9
    $region8: #{tpu_custom_call.1} parent=1 // pred_region
      _
    $region9: #{tpu_custom_call.1} parent=1 // pred_fallthru
      _
    // Predicated region
    $region10: #{tpu_custom_call.1} parent=1 // pred_check
      _
    $region11: #{tpu_custom_call.1} parent=1 // pred_check_branch
      %17 = sbr.rel (0) target = $region13
    $region12: #{tpu_custom_call.1} parent=1 // pred_region
      _
    $region13: #{tpu_custom_call.1} parent=1 // pred_fallthru
      _
    // Predicated region
    $region14: #{tpu_custom_call.1} parent=1 // pred_check
      _
    $region15: #{tpu_custom_call.1} parent=1 // pred_check_branch
      %19 = sbr.rel (0) target = $region17
    $region16: #{tpu_custom_call.1} parent=1 // pred_region
      _
    $region17: #{tpu_custom_call.1} parent=1 // pred_fallthru
      _
    // Predicated region
    $region18: #{tpu_custom_call.1} parent=1 // pred_check
      _
    $region19: #{tpu_custom_call.1} parent=1 // pred_check_branch
      %21 = sbr.rel (0) target = $region21
    $region20: #{tpu_custom_call.1} parent=1 // pred_region
      _
    $region21: #{tpu_custom_call.1} parent=1 // pred_fallthru
      _
    // Predicated region
    $region22: #{tpu_custom_call.1} parent=1 // pred_check
      _
    $region23: #{tpu_custom_call.1} parent=1 // pred_check_branch
      %23 = sbr.rel (0) target = $region25
    $region24: #{tpu_custom_call.1} parent=1 // pred_region
      _
    $region25: #{tpu_custom_call.1} parent=1 // pred_fallthru
      _
    %v25 = vld [vmem:[%s0] sm:$0xff]
    %v26 = vld [vmem:[%s0 + $0x8] sm:$0xff]
    %v27 = vld [vmem:[%s0 + $0x10] sm:$0xff]
    %v28 = vld [vmem:[%s0 + $0x18] sm:$0xff]
    %v29 = vld [vmem:[%s0 + $0x20] sm:$0xff]
    %v30 = vld [vmem:[%s0 + $0x28] sm:$0xff]
    %v31 = vld [vmem:[%s0 + $0x30] sm:$0xff]
    %v32 = vld [vmem:[%s0 + $0x38] sm:$0xff]
    %v33 = vadd.f32 %v25, %v26
    %v34 = vadd.f32 %v33, %v27
    %v35 = vadd.f32 %v34, %v28
    %36 = vadd.xlane.f32.xlu0 %v35
    %v37 = vpop.xlane.xlu0 %36
    %v38 = vadd.f32 %v29, %v30
    %v39 = vadd.f32 %v38, %v31
    %v40 = vadd.f32 %v39, %v32
    %41 = vadd.xlane.f32.xlu0 %v40
    %v42 = vpop.xlane.xlu0 %41
    %v43 = vmul.f32 %v37, 0.001953125
    %v44 = vmul.f32 %v42, 0.001953125
    %v45 = vmul.f32 %v25, %v25
    %v46 = vmul.f32 %v26, %v26
    %v47 = vmul.f32 %v27, %v27
    %v48 = vmul.f32 %v28, %v28
    %v49 = vmul.f32 %v29, %v29
    %v50 = vmul.f32 %v30, %v30
    %v51 = vmul.f32 %v31, %v31
    %v52 = vmul.f32 %v32, %v32
    %v53 = vadd.f32 %v45, %v46
    %v54 = vadd.f32 %v53, %v47
    %v55 = vadd.f32 %v54, %v48
    %56 = vadd.xlane.f32.xlu0 %v55
    %v57 = vpop.xlane.xlu0 %56
    %v58 = vadd.f32 %v49, %v50
    %v59 = vadd.f32 %v58, %v51
    %v60 = vadd.f32 %v59, %v52
    %61 = vadd.xlane.f32.xlu0 %v60
    %v62 = vpop.xlane.xlu0 %61
    %v63 = vmul.f32 %v57, 0.001953125
    %v64 = vmul.f32 %v62, 0.001953125
    %v65 = vmul.f32 %v43, %v43
    %v66 = vmul.f32 %v44, %v44
    %v67 = vsub.f32 %v63, %v65
    %v68 = vsub.f32 %v64, %v66
    %v69 = vmax.f32 %v67, 0.0
    %v70 = vmax.f32 %v68, 0.0
    %v71 = vld [vmem:[%s1] sm:$0xff]
    %v72 = vld [vmem:[%s1 + $0x8] sm:$0xff]
    %v73 = vadd.f32 %v69, 1e-05
    %v74 = vadd.f32 %v70, 1e-05
    %v75 = vrsqrt.pop %v73
    %v76 = vrsqrt.pop %v74
    %v77 = vmul.f32 %v71, %v75
    %v78 = vmul.f32 %v72, %v76
    %v79 = vld [vmem:[%s2] sm:$0xff]
    %v80 = vld [vmem:[%s2 + $0x8] sm:$0xff]
    %v81 = vrcp.pop %v77
    %v82 = vmul.f32 %v79, %v81
    %v83 = vrcp.pop %v78
    %v84 = vmul.f32 %v80, %v83
    %v85 = vsub.f32 %v43, %v82
    %v86 = vsub.f32 %v44, %v84
    %88 = vset.pattern.permute.xlu0 0
    %89 = vperm.xlu0 %88, %v85
    %v90 = vpop.permute.xlu0 %89
    %93 = vset.pattern.permute.xlu0 0
    %94 = vperm.xlu0 %93, %v86
    %v95 = vpop.permute.xlu0 %94
    %v97 = vsub.f32 %v25, %v90
    %v98 = vsub.f32 %v26, %v90
    %v99 = vsub.f32 %v27, %v90
    %v100 = vsub.f32 %v28, %v90
    %v101 = vsub.f32 %v29, %v95
    %v102 = vsub.f32 %v30, %v95
    %v103 = vsub.f32 %v31, %v95
    %v104 = vsub.f32 %v32, %v95
    %v105 = vlaneseq
    %v106 = vand.u32 %v105, 127
    %v107 = vadd.s32 %v106, 128
    %v108 = vadd.s32 %v106, 256
    %v109 = vadd.s32 %v106, 384
    %vm110 = vcmp.lt.s32.totalorder %v106, 0
    %v111 = vsub.s32 0, %v106
    %v112 = vsel %vm110, %v111, %v106
    %v113 = vshrl.u32 %v112, 7
    %v114 = vand.u32 %v112, 127
    %v115 = vsub.s32 0, %v114
    %v116 = vsel %vm110, %v115, %v114
    %vm117 = vcmp.lt.s32.totalorder %v107, 0
    %v118 = vsub.s32 0, %v107
    %v119 = vsel %vm117, %v118, %v107
    %v120 = vshrl.u32 %v119, 7
    %v121 = vand.u32 %v119, 127
    %v122 = vsub.s32 0, %v121
    %v123 = vsel %vm117, %v122, %v121
    %vm124 = vcmp.lt.s32.totalorder %v108, 0
    %v125 = vsub.s32 0, %v108
    %v126 = vsel %vm124, %v125, %v108
    %v127 = vshrl.u32 %v126, 7
    %v128 = vand.u32 %v126, 127
    %v129 = vsub.s32 0, %v128
    %v130 = vsel %vm124, %v129, %v128
    %vm131 = vcmp.lt.s32.totalorder %v109, 0
    %v132 = vsub.s32 0, %v109
    %v133 = vsel %vm131, %v132, %v109
    %v134 = vshrl.u32 %v133, 7
    %v135 = vand.u32 %v133, 127
    %v136 = vsub.s32 0, %v135
    %v137 = vsel %vm131, %v136, %v135
    %vm138 = vcmp.ne.s32.totalorder %v116, 0
    %vm139 = vcmp.ne.s32.totalorder %v123, 0
    %vm140 = vcmp.ne.s32.totalorder %v130, 0
    %vm141 = vcmp.ne.s32.totalorder %v137, 0
    %vm142 = vcmp.lt.s32.totalorder %v116, 0
    %vm143 = vcmp.lt.s32.totalorder %v123, 0
    %vm144 = vcmp.lt.s32.totalorder %v130, 0
    %vm145 = vcmp.lt.s32.totalorder %v137, 0
    %vm146 = vmand %vm142, %vm138
    %vm147 = vmand %vm143, %vm139
    %vm148 = vmand %vm144, %vm140
    %vm149 = vmand %vm145, %vm141
    %v150 = vadd.s32 %v116, 128
    %v151 = vadd.s32 %v123, 128
    %v152 = vadd.s32 %v130, 128
    %v153 = vadd.s32 %v137, 128
    %v154 = vsel %vm146, %v150, %v116
    %v155 = vsel %vm147, %v151, %v123
    %v156 = vsel %vm148, %v152, %v130
    %v157 = vsel %vm149, %v153, %v137
    %vm158 = vcmp.eq.s32.totalorder %v154, 0
    %vm159 = vcmp.eq.s32.totalorder %v155, 0
    %vm160 = vcmp.eq.s32.totalorder %v156, 0
    %vm161 = vcmp.eq.s32.totalorder %v157, 0
    %162 = vrot.lane.b32.xlu0 %v97, 1
    %v163 = vpop.permute.xlu0 %162
    %164 = vrot.lane.b32.xlu0 %v101, 1
    %v165 = vpop.permute.xlu0 %164
    %166 = vrot.lane.b32.xlu0 %v98, 1
    %v167 = vpop.permute.xlu0 %166
    %168 = vrot.lane.b32.xlu0 %v102, 1
    %v169 = vpop.permute.xlu0 %168
    %170 = vrot.lane.b32.xlu0 %v99, 1
    %v171 = vpop.permute.xlu0 %170
    %172 = vrot.lane.b32.xlu0 %v103, 1
    %v173 = vpop.permute.xlu0 %172
    %174 = vrot.lane.b32.xlu0 %v100, 1
    %v175 = vpop.permute.xlu0 %174
    %176 = vrot.lane.b32.xlu0 %v104, 1
    %v177 = vpop.permute.xlu0 %176
    %vm178 = vcmp.lt.s32.totalorder %v106, 1
    %v179 = vsel %vm178, %v171, %v175
    %v180 = vsel %vm178, %v173, %v177
    %v181 = vsel %vm178, %v167, %v171
    %v182 = vsel %vm178, %v169, %v173
    %v183 = vsel %vm178, %v163, %v167
    %v184 = vsel %vm178, %v165, %v169
    %v185 = vsel %vm178, %v175, %v163
    %v186 = vsel %vm178, %v177, %v165
    %v187 = vsel %vm158, 1, 0
    %v188 = vsel %vm159, 1, 0
    %v189 = vsel %vm160, 1, 0
    %v190 = vsel %vm161, 1, 0
    %vm191 = vcmp.eq.s32.totalorder %v187, 1
    %vm192 = vcmp.eq.s32.totalorder %v188, 1
    %vm193 = vcmp.eq.s32.totalorder %v189, 1
    %vm194 = vcmp.eq.s32.totalorder %v190, 1
    %v195 = vsel %vm191, 0.0, %v185
    %v196 = vsel %vm192, 0.0, %v183
    %v197 = vsel %vm193, 0.0, %v181
    %v198 = vsel %vm194, 0.0, %v179
    %v199 = vsel %vm191, 0.0, %v186
    %v200 = vsel %vm192, 0.0, %v184
    %v201 = vsel %vm193, 0.0, %v182
    %v202 = vsel %vm194, 0.0, %v180
    %vm203 = vcmp.eq.s32.totalorder %v154, 127
    %vm204 = vcmp.eq.s32.totalorder %v155, 127
    %vm205 = vcmp.eq.s32.totalorder %v156, 127
    %vm206 = vcmp.eq.s32.totalorder %v157, 127
    %207 = vrot.lane.b32.xlu0 %v97, 127
    %v208 = vpop.permute.xlu0 %207
    %209 = vrot.lane.b32.xlu0 %v101, 127
    %v210 = vpop.permute.xlu0 %209
    %211 = vrot.lane.b32.xlu0 %v98, 127
    %v212 = vpop.permute.xlu0 %211
    %213 = vrot.lane.b32.xlu0 %v102, 127
    %v214 = vpop.permute.xlu0 %213
    %215 = vrot.lane.b32.xlu0 %v99, 127
    %v216 = vpop.permute.xlu0 %215
    %217 = vrot.lane.b32.xlu0 %v103, 127
    %v218 = vpop.permute.xlu0 %217
    %219 = vrot.lane.b32.xlu0 %v100, 127
    %v220 = vpop.permute.xlu0 %219
    %221 = vrot.lane.b32.xlu0 %v104, 127
    %v222 = vpop.permute.xlu0 %221
    %vm223 = vcmp.lt.s32.totalorder %v106, 127
    %v224 = vsel %vm223, %v216, %v220
    %v225 = vsel %vm223, %v218, %v222
    %v226 = vsel %vm223, %v212, %v216
    %v227 = vsel %vm223, %v214, %v218
    %v228 = vsel %vm223, %v208, %v212
    %v229 = vsel %vm223, %v210, %v214
    %v230 = vsel %vm223, %v220, %v208
    %v231 = vsel %vm223, %v222, %v210
    %v232 = vsel %vm203, 1, 0
    %v233 = vsel %vm204, 1, 0
    %v234 = vsel %vm205, 1, 0
    %v235 = vsel %vm206, 1, 0
    %vm236 = vcmp.eq.s32.totalorder %v232, 1
    %vm237 = vcmp.eq.s32.totalorder %v233, 1
    %vm238 = vcmp.eq.s32.totalorder %v234, 1
    %vm239 = vcmp.eq.s32.totalorder %v235, 1
    %v240 = vsel %vm236, 0.0, %v228
    %v241 = vsel %vm237, 0.0, %v226
    %v242 = vsel %vm238, 0.0, %v224
    %v243 = vsel %vm239, 0.0, %v230
    %v244 = vsel %vm236, 0.0, %v229
    %v245 = vsel %vm237, 0.0, %v227
    %v246 = vsel %vm238, 0.0, %v225
    %v247 = vsel %vm239, 0.0, %v231
    %v248 = vlaneseq
    %v249 = vshrl.u32 %v248, 7
    %v250 = vadd.s32 %v249, 8
    %vm251 = vcmp.eq.s32.totalorder %v249, %v106
    %vm252 = vcmp.eq.s32.totalorder %v250, %v106
    %254 = vset.pattern.permute.xlu0 0
    %255 = vperm.xlu0 %254, %v77
    %v256 = vpop.permute.xlu0 %255
    %259 = vset.pattern.permute.xlu0 0
    %260 = vperm.xlu0 %259, %v78
    %v261 = vpop.permute.xlu0 %260
    %v263 = vsel %vm251, %v256, 0.0
    %v264 = vsel %vm252, %v261, 0.0
    %vm265 = vcmask 130048
    %v266 = vsel %vm265, %v263, 0.0
    %v267 = vsel %vm265, %v264, 0.0
    %v268 = vadd.f32 %v266, %v267
    %v269 = vrot.slane %v268, 4
    %v270 = vadd.f32 %v268, %v269
    %v271 = vrot.slane %v270, 2
    %v272 = vadd.f32 %v270, %v271
    %v273 = vrot.slane %v272, 1
    %v274 = vadd.f32 %v272, %v273
    %v275 = vld [vmem:[%s3] sm:$0xff]
    %v276 = vld [vmem:[%s3 + $0x8] sm:$0xff]
    %v277 = vld [vmem:[%s3 + $0x10] sm:$0xff]
    %v278 = vld [vmem:[%s3 + $0x18] sm:$0xff]
    %v279 = vmul.f32 %v275, %v274
    %v280 = vmul.f32 %v276, %v274
    %v281 = vmul.f32 %v277, %v274
    %v282 = vmul.f32 %v278, %v274
    %v283 = vpack.c.bf16 %v280, %v279
    %v284 = vpack.c.bf16 %v282, %v281
    %s285 = scalar_lea.vmem %s3, 32
    %v286 = vld [vmem:[%s285] sm:$0xff]
    %v287 = vld [vmem:[%s285 + $0x8] sm:$0xff]
    %v288 = vld [vmem:[%s285 + $0x10] sm:$0xff]
    %v289 = vld [vmem:[%s285 + $0x18] sm:$0xff]
    %v290 = vmul.f32 %v286, %v274
    %v291 = vmul.f32 %v287, %v274
    %v292 = vmul.f32 %v288, %v274
    %v293 = vmul.f32 %v289, %v274
    %v294 = vpack.c.bf16 %v291, %v290
    %v295 = vpack.c.bf16 %v293, %v292
    %s296 = scalar_lea.vmem %s3, 64
    %v297 = vld [vmem:[%s296] sm:$0xff]
    %v298 = vld [vmem:[%s296 + $0x8] sm:$0xff]
    %v299 = vld [vmem:[%s296 + $0x10] sm:$0xff]
    %v300 = vld [vmem:[%s296 + $0x18] sm:$0xff]
    %v301 = vmul.f32 %v297, %v274
    %v302 = vmul.f32 %v298, %v274
    %v303 = vmul.f32 %v299, %v274
    %v304 = vmul.f32 %v300, %v274
    %v305 = vpack.c.bf16 %v302, %v301
    %v306 = vpack.c.bf16 %v304, %v303
    %v307 = vpack.c.bf16 %v101, %v97
    %v308 = vpack.c.bf16 %v102, %v98
    %v309 = vpack.c.bf16 %v103, %v99
    %v310 = vpack.c.bf16 %v104, %v100
    %v311 = vpack.c.bf16 %v199, %v195
    %v312 = vpack.c.bf16 %v200, %v196
    %v313 = vpack.c.bf16 %v201, %v197
    %v314 = vpack.c.bf16 %v202, %v198
    %v316 = vsel %vm265, %v283, 0
    %v319 = vsel %vm265, %v284, 0
    %321 = vmatprep.subr.bf16.mxu0 0
    %322 = vmatpush1.bf16.msra.mxu0 0
    %323 = vmatprep.subr.bf16.mxu0 0
    %324 = vmatpush1.bf16.msra.mxu0 0
    %325 = vmatprep.subr.bf16.mxu0 0
    %326 = vmatpush1.bf16.msra.mxu0 0
    %327 = vmatprep.subr.bf16.mxu0 0
    %328 = vmatpush1.bf16.msra.mxu0 0
    %329 = vmatprep.subr.bf16.mxu0 0
    %330 = vmatpush1.bf16.msra.mxu0 0
    %331 = vmatprep.subr.bf16.mxu0 0
    %332 = vmatpush1.bf16.msra.mxu0 0
    %333 = vmatprep.subr.bf16.mxu0 0
    %334 = vmatpush1.bf16.msra.mxu0 0
    %335 = vmatprep.subr.bf16.mxu0 %v312
    %336 = vmatpush1.bf16.msra.mxu0 %v311
    %337 = vmatprep.subr.bf16.mxu0 0
    %338 = vmatpush2.bf16.msra.mxu0 0
    %339 = vmatprep.subr.bf16.mxu0 0
    %340 = vmatpush2.bf16.msra.mxu0 0
    %341 = vmatprep.subr.bf16.mxu0 0
    %342 = vmatpush2.bf16.msra.mxu0 0
    %343 = vmatprep.subr.bf16.mxu0 0
    %344 = vmatpush2.bf16.msra.mxu0 0
    %345 = vmatprep.subr.bf16.mxu0 0
    %346 = vmatpush2.bf16.msra.mxu0 0
    %347 = vmatprep.subr.bf16.mxu0 0
    %348 = vmatpush2.bf16.msra.mxu0 0
    %349 = vmatprep.subr.bf16.mxu0 0
    %350 = vmatpush2.bf16.msra.mxu0 0
    %351 = vmatprep.subr.bf16.mxu0 0
    %352 = vmatpush2.bf16.msra.mxu0 0
    %353 = vmatprep.mubr.bf16.mxu0 0
    %354 = vmatmul.mubr.bf16.gmra.mxu0 %v316
    %v355 = vpop.f32.mrf.mxu0
    %v356 = vadd.f32 0.0, %v355
    %v357 = vpop.f32.mrf.mxu0
    %v358 = vadd.f32 0.0, %v357
    %v359 = vpop.f32.mrf.mxu0
    %v360 = vadd.f32 0.0, %v359
    %v361 = vpop.f32.mrf.mxu0
    %v362 = vadd.f32 0.0, %v361
    %363 = vmatprep.mubr.bf16.mxu0 0
    %364 = vmatmul.mubr.bf16.gmra.mxu0 %v319
    %v365 = vpop.f32.mrf.mxu0
    %v366 = vadd.f32 0.0, %v365
    %v367 = vpop.f32.mrf.mxu0
    %v368 = vadd.f32 0.0, %v367
    %v369 = vpop.f32.mrf.mxu0
    %v370 = vadd.f32 0.0, %v369
    %v371 = vpop.f32.mrf.mxu0
    %v372 = vadd.f32 0.0, %v371
    %373 = vdwg.mxu0
    %374 = vmatprep.subr.bf16.mxu0 0
    %375 = vmatpush1.bf16.msra.mxu0 0
    %376 = vmatprep.subr.bf16.mxu0 0
    %377 = vmatpush1.bf16.msra.mxu0 0
    %378 = vmatprep.subr.bf16.mxu0 0
    %379 = vmatpush1.bf16.msra.mxu0 0
    %380 = vmatprep.subr.bf16.mxu0 0
    %381 = vmatpush1.bf16.msra.mxu0 0
    %382 = vmatprep.subr.bf16.mxu0 0
    %383 = vmatpush1.bf16.msra.mxu0 0
    %384 = vmatprep.subr.bf16.mxu0 0
    %385 = vmatpush1.bf16.msra.mxu0 0
    %386 = vmatprep.subr.bf16.mxu0 0
    %387 = vmatpush1.bf16.msra.mxu0 0
    %388 = vmatprep.subr.bf16.mxu0 %v314
    %389 = vmatpush1.bf16.msra.mxu0 %v313
    %390 = vmatprep.subr.bf16.mxu0 0
    %391 = vmatpush2.bf16.msra.mxu0 0
    %392 = vmatprep.subr.bf16.mxu0 0
    %393 = vmatpush2.bf16.msra.mxu0 0
    %394 = vmatprep.subr.bf16.mxu0 0
    %395 = vmatpush2.bf16.msra.mxu0 0
    %396 = vmatprep.subr.bf16.mxu0 0
    %397 = vmatpush2.bf16.msra.mxu0 0
    %398 = vmatprep.subr.bf16.mxu0 0
    %399 = vmatpush2.bf16.msra.mxu0 0
    %400 = vmatprep.subr.bf16.mxu0 0
    %401 = vmatpush2.bf16.msra.mxu0 0
    %402 = vmatprep.subr.bf16.mxu0 0
    %403 = vmatpush2.bf16.msra.mxu0 0
    %404 = vmatprep.subr.bf16.mxu0 0
    %405 = vmatpush2.bf16.msra.mxu0 0
    %406 = vmatprep.mubr.bf16.mxu0 0
    %407 = vmatmul.mubr.bf16.gmra.mxu0 %v316
    %v408 = vpop.f32.mrf.mxu0
    %v409 = vadd.f32 0.0, %v408
    %v410 = vpop.f32.mrf.mxu0
    %v411 = vadd.f32 0.0, %v410
    %v412 = vpop.f32.mrf.mxu0
    %v413 = vadd.f32 0.0, %v412
    %v414 = vpop.f32.mrf.mxu0
    %v415 = vadd.f32 0.0, %v414
    %416 = vmatprep.mubr.bf16.mxu0 0
    %417 = vmatmul.mubr.bf16.gmra.mxu0 %v319
    %v418 = vpop.f32.mrf.mxu0
    %v419 = vadd.f32 0.0, %v418
    %v420 = vpop.f32.mrf.mxu0
    %v421 = vadd.f32 0.0, %v420
    %v422 = vpop.f32.mrf.mxu0
    %v423 = vadd.f32 0.0, %v422
    %v424 = vpop.f32.mrf.mxu0
    %v425 = vadd.f32 0.0, %v424
    %426 = vdwg.mxu0
    %v428 = vsel %vm265, %v294, 0
    %v431 = vsel %vm265, %v295, 0
    %433 = vmatprep.subr.bf16.mxu0 0
    %434 = vmatpush1.bf16.msra.mxu0 0
    %435 = vmatprep.subr.bf16.mxu0 0
    %436 = vmatpush1.bf16.msra.mxu0 0
    %437 = vmatprep.subr.bf16.mxu0 0
    %438 = vmatpush1.bf16.msra.mxu0 0
    %439 = vmatprep.subr.bf16.mxu0 0
    %440 = vmatpush1.bf16.msra.mxu0 0
    %441 = vmatprep.subr.bf16.mxu0 0
    %442 = vmatpush1.bf16.msra.mxu0 0
    %443 = vmatprep.subr.bf16.mxu0 0
    %444 = vmatpush1.bf16.msra.mxu0 0
    %445 = vmatprep.subr.bf16.mxu0 0
    %446 = vmatpush1.bf16.msra.mxu0 0
    %447 = vmatprep.subr.bf16.mxu0 %v308
    %448 = vmatpush1.bf16.msra.mxu0 %v307
    %449 = vmatprep.subr.bf16.mxu0 0
    %450 = vmatpush2.bf16.msra.mxu0 0
    %451 = vmatprep.subr.bf16.mxu0 0
    %452 = vmatpush2.bf16.msra.mxu0 0
    %453 = vmatprep.subr.bf16.mxu0 0
    %454 = vmatpush2.bf16.msra.mxu0 0
    %455 = vmatprep.subr.bf16.mxu0 0
    %456 = vmatpush2.bf16.msra.mxu0 0
    %457 = vmatprep.subr.bf16.mxu0 0
    %458 = vmatpush2.bf16.msra.mxu0 0
    %459 = vmatprep.subr.bf16.mxu0 0
    %460 = vmatpush2.bf16.msra.mxu0 0
    %461 = vmatprep.subr.bf16.mxu0 0
    %462 = vmatpush2.bf16.msra.mxu0 0
    %463 = vmatprep.subr.bf16.mxu0 0
    %464 = vmatpush2.bf16.msra.mxu0 0
    %465 = vmatprep.mubr.bf16.mxu0 0
    %466 = vmatmul.mubr.bf16.gmra.mxu0 %v428
    %v467 = vpop.f32.mrf.mxu0
    %v468 = vadd.f32 %v356, %v467
    %v469 = vpop.f32.mrf.mxu0
    %v470 = vadd.f32 %v358, %v469
    %v471 = vpop.f32.mrf.mxu0
    %v472 = vadd.f32 %v360, %v471
    %v473 = vpop.f32.mrf.mxu0
    %v474 = vadd.f32 %v362, %v473
    %475 = vmatprep.mubr.bf16.mxu0 0
    %476 = vmatmul.mubr.bf16.gmra.mxu0 %v431
    %v477 = vpop.f32.mrf.mxu0
    %v478 = vadd.f32 %v366, %v477
    %v479 = vpop.f32.mrf.mxu0
    %v480 = vadd.f32 %v368, %v479
    %v481 = vpop.f32.mrf.mxu0
    %v482 = vadd.f32 %v370, %v481
    %v483 = vpop.f32.mrf.mxu0
    %v484 = vadd.f32 %v372, %v483
    %485 = vdwg.mxu0
    %486 = vmatprep.subr.bf16.mxu0 0
    %487 = vmatpush1.bf16.msra.mxu0 0
    %488 = vmatprep.subr.bf16.mxu0 0
    %489 = vmatpush1.bf16.msra.mxu0 0
    %490 = vmatprep.subr.bf16.mxu0 0
    %491 = vmatpush1.bf16.msra.mxu0 0
    %492 = vmatprep.subr.bf16.mxu0 0
    %493 = vmatpush1.bf16.msra.mxu0 0
    %494 = vmatprep.subr.bf16.mxu0 0
    %495 = vmatpush1.bf16.msra.mxu0 0
    %496 = vmatprep.subr.bf16.mxu0 0
    %497 = vmatpush1.bf16.msra.mxu0 0
    %498 = vmatprep.subr.bf16.mxu0 0
    %499 = vmatpush1.bf16.msra.mxu0 0
    %500 = vmatprep.subr.bf16.mxu0 %v310
    %501 = vmatpush1.bf16.msra.mxu0 %v309
    %502 = vmatprep.subr.bf16.mxu0 0
    %503 = vmatpush2.bf16.msra.mxu0 0
    %504 = vmatprep.subr.bf16.mxu0 0
    %505 = vmatpush2.bf16.msra.mxu0 0
    %506 = vmatprep.subr.bf16.mxu0 0
    %507 = vmatpush2.bf16.msra.mxu0 0
    %508 = vmatprep.subr.bf16.mxu0 0
    %509 = vmatpush2.bf16.msra.mxu0 0
    %510 = vmatprep.subr.bf16.mxu0 0
    %511 = vmatpush2.bf16.msra.mxu0 0
    %512 = vmatprep.subr.bf16.mxu0 0
    %513 = vmatpush2.bf16.msra.mxu0 0
    %514 = vmatprep.subr.bf16.mxu0 0
    %515 = vmatpush2.bf16.msra.mxu0 0
    %516 = vmatprep.subr.bf16.mxu0 0
    %517 = vmatpush2.bf16.msra.mxu0 0
    %518 = vmatprep.mubr.bf16.mxu0 0
    %519 = vmatmul.mubr.bf16.gmra.mxu0 %v428
    %v520 = vpop.f32.mrf.mxu0
    %v521 = vadd.f32 %v409, %v520
    %v522 = vpop.f32.mrf.mxu0
    %v523 = vadd.f32 %v411, %v522
    %v524 = vpop.f32.mrf.mxu0
    %v525 = vadd.f32 %v413, %v524
    %v526 = vpop.f32.mrf.mxu0
    %v527 = vadd.f32 %v415, %v526
    %528 = vmatprep.mubr.bf16.mxu0 0
    %529 = vmatmul.mubr.bf16.gmra.mxu0 %v431
    %v530 = vpop.f32.mrf.mxu0
    %v531 = vadd.f32 %v419, %v530
    %v532 = vpop.f32.mrf.mxu0
    %v533 = vadd.f32 %v421, %v532
    %v534 = vpop.f32.mrf.mxu0
    %v535 = vadd.f32 %v423, %v534
    %v536 = vpop.f32.mrf.mxu0
    %v537 = vadd.f32 %v425, %v536
    %538 = vdwg.mxu0
    %v539 = vpack.c.bf16 %v244, %v240
    %v540 = vpack.c.bf16 %v245, %v241
    %v541 = vpack.c.bf16 %v246, %v242
    %v542 = vpack.c.bf16 %v247, %v243
    %v544 = vsel %vm265, %v305, 0
    %v547 = vsel %vm265, %v306, 0
    %549 = vmatprep.subr.bf16.mxu0 0
    %550 = vmatpush1.bf16.msra.mxu0 0
    %551 = vmatprep.subr.bf16.mxu0 0
    %552 = vmatpush1.bf16.msra.mxu0 0
    %553 = vmatprep.subr.bf16.mxu0 0
    %554 = vmatpush1.bf16.msra.mxu0 0
    %555 = vmatprep.subr.bf16.mxu0 0
    %556 = vmatpush1.bf16.msra.mxu0 0
    %557 = vmatprep.subr.bf16.mxu0 0
    %558 = vmatpush1.bf16.msra.mxu0 0
    %559 = vmatprep.subr.bf16.mxu0 0
    %560 = vmatpush1.bf16.msra.mxu0 0
    %561 = vmatprep.subr.bf16.mxu0 0
    %562 = vmatpush1.bf16.msra.mxu0 0
    %563 = vmatprep.subr.bf16.mxu0 %v540
    %564 = vmatpush1.bf16.msra.mxu0 %v539
    %565 = vmatprep.subr.bf16.mxu0 0
    %566 = vmatpush2.bf16.msra.mxu0 0
    %567 = vmatprep.subr.bf16.mxu0 0
    %568 = vmatpush2.bf16.msra.mxu0 0
    %569 = vmatprep.subr.bf16.mxu0 0
    %570 = vmatpush2.bf16.msra.mxu0 0
    %571 = vmatprep.subr.bf16.mxu0 0
    %572 = vmatpush2.bf16.msra.mxu0 0
    %573 = vmatprep.subr.bf16.mxu0 0
    %574 = vmatpush2.bf16.msra.mxu0 0
    %575 = vmatprep.subr.bf16.mxu0 0
    %576 = vmatpush2.bf16.msra.mxu0 0
    %577 = vmatprep.subr.bf16.mxu0 0
    %578 = vmatpush2.bf16.msra.mxu0 0
    %579 = vmatprep.subr.bf16.mxu0 0
    %580 = vmatpush2.bf16.msra.mxu0 0
    %581 = vmatprep.mubr.bf16.mxu0 0
    %582 = vmatmul.mubr.bf16.gmra.mxu0 %v544
    %v583 = vpop.f32.mrf.mxu0
    %v584 = vadd.f32 0.0, %v583
    %v585 = vpop.f32.mrf.mxu0
    %v586 = vadd.f32 0.0, %v585
    %v587 = vpop.f32.mrf.mxu0
    %v588 = vadd.f32 0.0, %v587
    %v589 = vpop.f32.mrf.mxu0
    %v590 = vadd.f32 0.0, %v589
    %591 = vmatprep.mubr.bf16.mxu0 0
    %592 = vmatmul.mubr.bf16.gmra.mxu0 %v547
    %v593 = vpop.f32.mrf.mxu0
    %v594 = vadd.f32 0.0, %v593
    %v595 = vpop.f32.mrf.mxu0
    %v596 = vadd.f32 0.0, %v595
    %v597 = vpop.f32.mrf.mxu0
    %v598 = vadd.f32 0.0, %v597
    %v599 = vpop.f32.mrf.mxu0
    %v600 = vadd.f32 0.0, %v599
    %601 = vdwg.mxu0
    %602 = vmatprep.subr.bf16.mxu0 0
    %603 = vmatpush1.bf16.msra.mxu0 0
    %604 = vmatprep.subr.bf16.mxu0 0
    %605 = vmatpush1.bf16.msra.mxu0 0
    %606 = vmatprep.subr.bf16.mxu0 0
    %607 = vmatpush1.bf16.msra.mxu0 0
    %608 = vmatprep.subr.bf16.mxu0 0
    %609 = vmatpush1.bf16.msra.mxu0 0
    %610 = vmatprep.subr.bf16.mxu0 0
    %611 = vmatpush1.bf16.msra.mxu0 0
    %612 = vmatprep.subr.bf16.mxu0 0
    %613 = vmatpush1.bf16.msra.mxu0 0
    %614 = vmatprep.subr.bf16.mxu0 0
    %615 = vmatpush1.bf16.msra.mxu0 0
    %616 = vmatprep.subr.bf16.mxu0 %v542
    %617 = vmatpush1.bf16.msra.mxu0 %v541
    %618 = vmatprep.subr.bf16.mxu0 0
    %619 = vmatpush2.bf16.msra.mxu0 0
    %620 = vmatprep.subr.bf16.mxu0 0
    %621 = vmatpush2.bf16.msra.mxu0 0
    %622 = vmatprep.subr.bf16.mxu0 0
    %623 = vmatpush2.bf16.msra.mxu0 0
    %624 = vmatprep.subr.bf16.mxu0 0
    %625 = vmatpush2.bf16.msra.mxu0 0
    %626 = vmatprep.subr.bf16.mxu0 0
    %627 = vmatpush2.bf16.msra.mxu0 0
    %628 = vmatprep.subr.bf16.mxu0 0
    %629 = vmatpush2.bf16.msra.mxu0 0
    %630 = vmatprep.subr.bf16.mxu0 0
    %631 = vmatpush2.bf16.msra.mxu0 0
    %632 = vmatprep.subr.bf16.mxu0 0
    %633 = vmatpush2.bf16.msra.mxu0 0
    %634 = vmatprep.mubr.bf16.mxu0 0
    %635 = vmatmul.mubr.bf16.gmra.mxu0 %v544
    %v636 = vpop.f32.mrf.mxu0
    %v637 = vadd.f32 0.0, %v636
    %v638 = vpop.f32.mrf.mxu0
    %v639 = vadd.f32 0.0, %v638
    %v640 = vpop.f32.mrf.mxu0
    %v641 = vadd.f32 0.0, %v640
    %v642 = vpop.f32.mrf.mxu0
    %v643 = vadd.f32 0.0, %v642
    %644 = vmatprep.mubr.bf16.mxu0 0
    %645 = vmatmul.mubr.bf16.gmra.mxu0 %v547
    %v646 = vpop.f32.mrf.mxu0
    %v647 = vadd.f32 0.0, %v646
    %v648 = vpop.f32.mrf.mxu0
    %v649 = vadd.f32 0.0, %v648
    %v650 = vpop.f32.mrf.mxu0
    %v651 = vadd.f32 0.0, %v650
    %v652 = vpop.f32.mrf.mxu0
    %v653 = vadd.f32 0.0, %v652
    %654 = vdwg.mxu0
    %v655 = vadd.f32 %v468, %v584
    %v656 = vadd.f32 %v470, %v586
    %v657 = vadd.f32 %v521, %v637
    %v658 = vadd.f32 %v523, %v639
    %v659 = vadd.f32 %v472, %v588
    %v660 = vadd.f32 %v474, %v590
    %v661 = vadd.f32 %v525, %v641
    %v662 = vadd.f32 %v527, %v643
    %v663 = vadd.f32 %v478, %v594
    %v664 = vadd.f32 %v480, %v596
    %v665 = vadd.f32 %v531, %v647
    %v666 = vadd.f32 %v533, %v649
    %v667 = vadd.f32 %v482, %v598
    %v668 = vadd.f32 %v484, %v600
    %v669 = vadd.f32 %v535, %v651
    %v670 = vadd.f32 %v537, %v653
    %v671 = vadd.f32 %v655, %v656
    %v672 = vadd.f32 %v671, %v657
    %v673 = vadd.f32 %v672, %v658
    %674 = vadd.xlane.f32.xlu0 %v673
    %v675 = vpop.xlane.xlu0 %674
    %v676 = vadd.f32 %v659, %v660
    %v677 = vadd.f32 %v676, %v661
    %v678 = vadd.f32 %v677, %v662
    %679 = vadd.xlane.f32.xlu0 %v678
    %v680 = vpop.xlane.xlu0 %679
    %v681 = vadd.f32 %v663, %v664
    %v682 = vadd.f32 %v681, %v665
    %v683 = vadd.f32 %v682, %v666
    %684 = vadd.xlane.f32.xlu0 %v683
    %v685 = vpop.xlane.xlu0 %684
    %v686 = vadd.f32 %v667, %v668
    %v687 = vadd.f32 %v686, %v669
    %v688 = vadd.f32 %v687, %v670
    %689 = vadd.xlane.f32.xlu0 %v688
    %v690 = vpop.xlane.xlu0 %689
    %v691 = vmul.f32 %v675, 0.001953125
    %v692 = vmul.f32 %v680, 0.001953125
    %v693 = vmul.f32 %v685, 0.001953125
    %v694 = vmul.f32 %v690, 0.001953125
    %v695 = vmul.f32 %v655, %v655
    %v696 = vmul.f32 %v656, %v656
    %v697 = vmul.f32 %v657, %v657
    %v698 = vmul.f32 %v658, %v658
    %v699 = vmul.f32 %v659, %v659
    %v700 = vmul.f32 %v660, %v660
    %v701 = vmul.f32 %v661, %v661
    %v702 = vmul.f32 %v662, %v662
    %v703 = vmul.f32 %v663, %v663
    %v704 = vmul.f32 %v664, %v664
    %v705 = vmul.f32 %v665, %v665
    %v706 = vmul.f32 %v666, %v666
    %v707 = vmul.f32 %v667, %v667
    %v708 = vmul.f32 %v668, %v668
    %v709 = vmul.f32 %v669, %v669
    %v710 = vmul.f32 %v670, %v670
    %v711 = vadd.f32 %v695, %v696
    %v712 = vadd.f32 %v711, %v697
    %v713 = vadd.f32 %v712, %v698
    %714 = vadd.xlane.f32.xlu0 %v713
    %v715 = vpop.xlane.xlu0 %714
    %v716 = vadd.f32 %v699, %v700
    %v717 = vadd.f32 %v716, %v701
    %v718 = vadd.f32 %v717, %v702
    %719 = vadd.xlane.f32.xlu0 %v718
    %v720 = vpop.xlane.xlu0 %719
    %v721 = vadd.f32 %v703, %v704
    %v722 = vadd.f32 %v721, %v705
    %v723 = vadd.f32 %v722, %v706
    %724 = vadd.xlane.f32.xlu0 %v723
    %v725 = vpop.xlane.xlu0 %724
    %v726 = vadd.f32 %v707, %v708
    %v727 = vadd.f32 %v726, %v709
    %v728 = vadd.f32 %v727, %v710
    %729 = vadd.xlane.f32.xlu0 %v728
    %v730 = vpop.xlane.xlu0 %729
    %v731 = vmul.f32 %v715, 0.001953125
    %v732 = vmul.f32 %v720, 0.001953125
    %v733 = vmul.f32 %v725, 0.001953125
    %v734 = vmul.f32 %v730, 0.001953125
    %v735 = vmul.f32 %v691, %v691
    %v736 = vmul.f32 %v692, %v692
    %v737 = vmul.f32 %v693, %v693
    %v738 = vmul.f32 %v694, %v694
    %v739 = vsub.f32 %v731, %v735
    %v740 = vsub.f32 %v732, %v736
    %v741 = vsub.f32 %v733, %v737
    %v742 = vsub.f32 %v734, %v738
    %v743 = vmax.f32 %v739, 0.0
    %v744 = vmax.f32 %v740, 0.0
    %v745 = vmax.f32 %v741, 0.0
    %v746 = vmax.f32 %v742, 0.0
    %v747 = vsub.f32 %v655, %v691
    %v748 = vsub.f32 %v656, %v691
    %v749 = vsub.f32 %v657, %v691
    %v750 = vsub.f32 %v658, %v691
    %v751 = vsub.f32 %v659, %v692
    %v752 = vsub.f32 %v660, %v692
    %v753 = vsub.f32 %v661, %v692
    %v754 = vsub.f32 %v662, %v692
    %v755 = vsub.f32 %v663, %v693
    %v756 = vsub.f32 %v664, %v693
    %v757 = vsub.f32 %v665, %v693
    %v758 = vsub.f32 %v666, %v693
    %v759 = vsub.f32 %v667, %v694
    %v760 = vsub.f32 %v668, %v694
    %v761 = vsub.f32 %v669, %v694
    %v762 = vsub.f32 %v670, %v694
    %v763 = vld [vmem:[%s4] sm:$0xff]
    %v764 = vld [vmem:[%s4 + $0x8] sm:$0xff]
    %v765 = vld [vmem:[%s4 + $0x10] sm:$0xff]
    %v766 = vld [vmem:[%s4 + $0x18] sm:$0xff]
    %v767 = vadd.f32 %v743, 1e-05
    %v768 = vadd.f32 %v744, 1e-05
    %v769 = vadd.f32 %v745, 1e-05
    %v770 = vadd.f32 %v746, 1e-05
    %v771 = vrsqrt.pop %v767
    %v772 = vrsqrt.pop %v768
    %v773 = vrsqrt.pop %v769
    %v774 = vrsqrt.pop %v770
    %v775 = vmul.f32 %v763, %v771
    %v776 = vmul.f32 %v764, %v772
    %v777 = vmul.f32 %v765, %v773
    %v778 = vmul.f32 %v766, %v774
    %780 = vset.pattern.permute.xlu0 0
    %781 = vperm.xlu0 %780, %v775
    %v782 = vpop.permute.xlu0 %781
    %785 = vset.pattern.permute.xlu0 0
    %786 = vperm.xlu0 %785, %v776
    %v787 = vpop.permute.xlu0 %786
    %790 = vset.pattern.permute.xlu0 0
    %791 = vperm.xlu0 %790, %v777
    %v792 = vpop.permute.xlu0 %791
    %795 = vset.pattern.permute.xlu0 0
    %796 = vperm.xlu0 %795, %v778
    %v797 = vpop.permute.xlu0 %796
    %v799 = vmul.f32 %v747, %v782
    %v800 = vmul.f32 %v748, %v782
    %v801 = vmul.f32 %v749, %v782
    %v802 = vmul.f32 %v750, %v782
    %v803 = vmul.f32 %v751, %v787
    %v804 = vmul.f32 %v752, %v787
    %v805 = vmul.f32 %v753, %v787
    %v806 = vmul.f32 %v754, %v787
    %v807 = vmul.f32 %v755, %v792
    %v808 = vmul.f32 %v756, %v792
    %v809 = vmul.f32 %v757, %v792
    %v810 = vmul.f32 %v758, %v792
    %v811 = vmul.f32 %v759, %v797
    %v812 = vmul.f32 %v760, %v797
    %v813 = vmul.f32 %v761, %v797
    %v814 = vmul.f32 %v762, %v797
    %v815 = vld [vmem:[%s5] sm:$0xff]
    %v816 = vld [vmem:[%s5 + $0x8] sm:$0xff]
    %v817 = vld [vmem:[%s5 + $0x10] sm:$0xff]
    %v818 = vld [vmem:[%s5 + $0x18] sm:$0xff]
    %820 = vset.pattern.permute.xlu0 0
    %821 = vperm.xlu0 %820, %v815
    %v822 = vpop.permute.xlu0 %821
    %825 = vset.pattern.permute.xlu0 0
    %826 = vperm.xlu0 %825, %v816
    %v827 = vpop.permute.xlu0 %826
    %830 = vset.pattern.permute.xlu0 0
    %831 = vperm.xlu0 %830, %v817
    %v832 = vpop.permute.xlu0 %831
    %835 = vset.pattern.permute.xlu0 0
    %836 = vperm.xlu0 %835, %v818
    %v837 = vpop.permute.xlu0 %836
    %v839 = vadd.f32 %v799, %v822
    %v840 = vadd.f32 %v800, %v822
    %v841 = vadd.f32 %v801, %v822
    %v842 = vadd.f32 %v802, %v822
    %v843 = vadd.f32 %v803, %v827
    %v844 = vadd.f32 %v804, %v827
    %v845 = vadd.f32 %v805, %v827
    %v846 = vadd.f32 %v806, %v827
    %v847 = vadd.f32 %v807, %v832
    %v848 = vadd.f32 %v808, %v832
    %v849 = vadd.f32 %v809, %v832
    %v850 = vadd.f32 %v810, %v832
    %v851 = vadd.f32 %v811, %v837
    %v852 = vadd.f32 %v812, %v837
    %v853 = vadd.f32 %v813, %v837
    %v854 = vadd.f32 %v814, %v837
    %v855 = vmax.f32 %v839, -1.0
    %v856 = vmax.f32 %v840, -1.0
    %v857 = vmax.f32 %v841, -1.0
    %v858 = vmax.f32 %v842, -1.0
    %v859 = vmax.f32 %v843, -1.0
    %v860 = vmax.f32 %v844, -1.0
    %v861 = vmax.f32 %v845, -1.0
    %v862 = vmax.f32 %v846, -1.0
    %v863 = vmax.f32 %v847, -1.0
    %v864 = vmax.f32 %v848, -1.0
    %v865 = vmax.f32 %v849, -1.0
    %v866 = vmax.f32 %v850, -1.0
    %v867 = vmax.f32 %v851, -1.0
    %v868 = vmax.f32 %v852, -1.0
    %v869 = vmax.f32 %v853, -1.0
    %v870 = vmax.f32 %v854, -1.0
    %v871 = vmin.f32 %v855, 1.0
    %v872 = vmin.f32 %v856, 1.0
    %v873 = vmin.f32 %v857, 1.0
    %v874 = vmin.f32 %v858, 1.0
    %v875 = vmin.f32 %v859, 1.0
    %v876 = vmin.f32 %v860, 1.0
    %v877 = vmin.f32 %v861, 1.0
    %v878 = vmin.f32 %v862, 1.0
    %v879 = vmin.f32 %v863, 1.0
    %v880 = vmin.f32 %v864, 1.0
    %v881 = vmin.f32 %v865, 1.0
    %v882 = vmin.f32 %v866, 1.0
    %v883 = vmin.f32 %v867, 1.0
    %v884 = vmin.f32 %v868, 1.0
    %v885 = vmin.f32 %v869, 1.0
    %v886 = vmin.f32 %v870, 1.0
    %887 = vst [vmem:[#allocation2] sm:$0xff] %v871
    %888 = vst [vmem:[#allocation2 + $0x8] sm:$0xff] %v872
    %889 = vst [vmem:[#allocation2 + $0x10] sm:$0xff] %v873
    %890 = vst [vmem:[#allocation2 + $0x18] sm:$0xff] %v874
    %891 = vst [vmem:[#allocation2 + $0x20] sm:$0xff] %v875
    %892 = vst [vmem:[#allocation2 + $0x28] sm:$0xff] %v876
    %893 = vst [vmem:[#allocation2 + $0x30] sm:$0xff] %v877
    %894 = vst [vmem:[#allocation2 + $0x38] sm:$0xff] %v878
    %895 = vst [vmem:[#allocation2 + $0x40] sm:$0xff] %v879
    %896 = vst [vmem:[#allocation2 + $0x48] sm:$0xff] %v880
    %897 = vst [vmem:[#allocation2 + $0x50] sm:$0xff] %v881
    %898 = vst [vmem:[#allocation2 + $0x58] sm:$0xff] %v882
    %899 = vst [vmem:[#allocation2 + $0x60] sm:$0xff] %v883
    %900 = vst [vmem:[#allocation2 + $0x68] sm:$0xff] %v884
    %901 = vst [vmem:[#allocation2 + $0x70] sm:$0xff] %v885
    %902 = vst [vmem:[#allocation2 + $0x78] sm:$0xff] %v886
    // Predicated region
    $region26: #{tpu_custom_call.1} parent=1 // pred_check
      _
    $region27: #{tpu_custom_call.1} parent=1 // pred_check_branch
      %904 = sbr.rel (0) target = $region29
    $region28: #{tpu_custom_call.1} parent=1 // pred_region
      %s906 = ssub.s32 2048, 2048
      %907 = vsyncadd [#allocation3], %s906
      %s908 = sshll.u32 [#allocation2], 4
      %s909 = int_to_ptr.vmem [resolvable:$true] %s908
      %914 = dma.vmem_to_hbm [thread:$0]  %s909, 2048, %s6, [#allocation3], 512, 512, 32
    $region29: #{tpu_custom_call.1} parent=1 // pred_fallthru
      _
    // Predicated region
    $region30: #{tpu_custom_call.1} parent=1 // pred_check
      _
    $region31: #{tpu_custom_call.1} parent=1 // pred_check_branch
      %916 = sbr.rel (0) target = $region33
    $region32: #{tpu_custom_call.1} parent=1 // pred_region
      %917 = dma.done [#allocation3], 2048
    $region33: #{tpu_custom_call.1} parent=1 // pred_fallthru
      _
    %918 = vsyncpa [#allocation3], 1

</llo_original>
